<compile_context>
chip_gen: v6e
topology: v6e:2x2x1
jax: 0.10.0
libtpu: 0.0.40
codegen_flags: <defaults>
</compile_context>

<pallas_src>
import jax
import jax.numpy as jnp
from jax.experimental import pallas as pl
from jax.experimental.pallas import tpu as pltpu


def _channel_attention_kernel(x_ref, len_ref, w_ref, o_ref):
    """One grid step == one (bt, E, T) batch slab, vectorized over the batch tile.

    x_ref   : VMEM (bt, E, T)  input slab (f32 or bf16)
    len_ref : VMEM (bt, 1, 1)  int32 valid sequence lengths
    w_ref   : SMEM (K,)        f32 Conv1d(1, 1, K, bias=False) taps
    o_ref   : VMEM (bt, E, T)  output slab (same dtype as x)
    """
    bt, e, t = x_ref.shape
    k = w_ref.shape[0]
    pad = (k - 1) // 2

    x = x_ref[...]                                               # (bt, E, T)
    lens = len_ref[...]                                          # (bt, 1, 1) int32
    tpos = jax.lax.broadcasted_iota(jnp.int32, (1, 1, t), 2)     # time index on lanes

    # 1/length (guard length == 0), folded into the time mask -> one f32 weight mask.
    inv_len = 1.0 / jnp.maximum(lens, 1).astype(jnp.float32)     # (bt, 1, 1)
    wmask = jnp.where(tpos < lens, inv_len, 0.0)                 # (bt, 1, T) f32

    # Length-masked average pool over the valid prefix (the PyTorch x_pack path).
    # bf16 x promotes to f32 in the product -> f32 accumulation for free.
    y_avg = jnp.sum(x * wmask, axis=2, keepdims=True)            # (bt, E, 1) f32
    # Max pool over the FULL (padded) time axis, exactly as the PyTorch module does.
    y_max = jnp.max(x, axis=2, keepdims=True).astype(jnp.float32)

    # conv(y_avg) + conv(y_max) == conv(y_avg + y_max): the conv is linear, bias-free.
    y = y_avg + y_max                                            # (bt, E, 1) f32

    # Conv1d(1, 1, k, padding=(k-1)//2) over the channel (sublane) axis:
    #   conv[c] = sum_d w[d] * y[c + d - pad], zero outside [0, E).
    # Implemented as zero-pad (concat) + k static sublane slices + scalar FMAs (VPU).
    if pad > 0:
        zpad = jnp.zeros((bt, pad, 1), jnp.float32)
        yp = jnp.concatenate([zpad, y, zpad], axis=1)            # (bt, E + 2*pad, 1)
    else:
        yp = y
    conv = w_ref[0] * yp[:, 0:e, :]
    for d in range(1, k):
        conv = conv + w_ref[d] * yp[:, d:d + e, :]

    att = jax.nn.sigmoid(conv)                                   # (bt, E, 1) f32, EUP
    o_ref[...] = (x * att.astype(x.dtype)).astype(o_ref.dtype)   # broadcast over time


def _vmem_limit_bytes():
    """Generation-aware scoped-VMEM limit with headroom for compiler internals."""
    cap = 64 * 1024 * 1024                       # conservative (v7x-sized) fallback
    try:
        info = pltpu.get_tpu_info()
        cap = int(getattr(info, "vmem_capacity_bytes", cap))
    except Exception:
        pass
    # v7x (64 MiB/TC) -> ~48 MiB scoped limit; v5e/v6e (128 MiB) -> ~102 MiB.
    return max(32 << 20, min(int(cap * 0.80), cap - (16 << 20)))


def _pick_batch_tile(b, e, t, itemsize, budget_bytes):
    """Batch-tile size: as large as the VMEM budget allows, but keep the grid long."""
    # Resident bytes per batch row in steady state:
    #   2x double-buffered input + 2x double-buffered output   (4 * itemsize)
    #   + ~2 block-sized compute temporaries (f32 sum temp, apply temp)
    per_row = e * t * (5 * itemsize + 8)
    bt_vmem = max(1, budget_bytes // max(per_row, 1))
    # Keep >= ~8 grid steps so the pipeline overlaps and both v7x TCs get work.
    bt_steps = max(1, b // 8)
    bt = max(1, min(bt_vmem, bt_steps, b))
    # Prefer an exact divisor of B (no ragged tail block) if it doesn't shrink the
    # block too much; otherwise rely on Pallas's remainder-block handling
    # (OOB reads are discarded per-row, OOB writes are dropped).
    for cand in range(bt, 0, -1):
        if b % cand == 0:
            if 2 * cand >= bt:
                bt = cand
            break
    return bt


def channel_attention(x, length, conv_w):
    """x: (B, E, T) f32/bf16, length: (B,) int, conv_w: (1, 1, K) -> (B, E, T)."""
    b, e, t = x.shape
    itemsize = jnp.dtype(x.dtype).itemsize
    w_flat = conv_w.reshape(-1).astype(jnp.float32)
    len3 = length.astype(jnp.int32).reshape(b, 1, 1)

    vmem_limit = _vmem_limit_bytes()
    bt = _pick_batch_tile(b, e, t, itemsize, vmem_limit - (4 << 20))
    # TODO(synk): if a single (E, T) slab exceeds the per-core VMEM budget (esp. v7x's
    # 64 MiB), add a T grid axis ("arbitrary") with (E, 1) sum/max scratch accumulators
    # and finalize conv+sigmoid on the last T step, applying attention in a second pass.

    grid_spec = pltpu.PrefetchScalarGridSpec(
        num_scalar_prefetch=0,
        grid=(pl.cdiv(b, bt),),
        in_specs=[
            pl.BlockSpec((bt, e, t), lambda g: (g, 0, 0)),          # x slab
            pl.BlockSpec((bt, 1, 1), lambda g: (g, 0, 0)),          # lengths
            pl.BlockSpec(memory_space=pltpu.MemorySpace.SMEM),      # conv taps (K,)
        ],
        out_specs=pl.BlockSpec((bt, e, t), lambda g: (g, 0, 0)),
    )
    # Note: input_output_aliases={0: 0} would save the output HBM allocation when the
    # caller does not reuse x; left off here because the demo reuses x.
    return pl.pallas_call(
        _channel_attention_kernel,
        out_shape=jax.ShapeDtypeStruct((b, e, t), x.dtype),
        grid_spec=grid_spec,
        compiler_params=pltpu.CompilerParams(
            dimension_semantics=("parallel",),      # batch steps independent (v7x TCs)
            vmem_limit_bytes=vmem_limit,
        ),
    )(x, len3, w_flat)


def channel_attention_ref(x, length, conv_w):
    """Pure-JAX reference reproducing the PyTorch forward semantics."""
    b, e, t = x.shape
    w = conv_w.reshape(-1)
    k = w.shape[0]
    pad = (k - 1) // 2
    mask = jnp.arange(t)[None, None, :] < length[:, None, None]
    y_avg = jnp.sum(jnp.where(mask, x, 0.0), axis=2) / length[:, None].astype(x.dtype)
    y_max = jnp.max(x, axis=2)

    def conv(y):  # (B, E) -> (B, E), 1-channel conv over E with zero padding
        yp = jnp.pad(y, ((0, 0), (pad, pad)))
        return sum(w[j] * yp[:, j:j + e] for j in range(k))

    att = jax.nn.sigmoid(conv(y_avg) + conv(y_max))
    return x * att[:, :, None]


if __name__ == "__main__":
    B, E, T, K = 2, 8, 128, 5

    key = jax.random.PRNGKey(0)
    kx, kw = jax.random.split(key)
    x = jax.random.normal(kx, (B, E, T), dtype=jnp.float32)
    length = jnp.array([100, 128], dtype=jnp.int32)
    # Deterministic Conv1d(1, 1, 5, bias=False) weight (synthetic init, no checkpoint).
    conv_w = (jax.random.normal(kw, (1, 1, K), dtype=jnp.float32) *
              (1.0 / jnp.sqrt(jnp.float32(K))))

    ref = channel_attention_ref(x, length, conv_w)

    out = channel_attention(x, length, conv_w)
    jax.block_until_ready(out)

    assert out.shape == x.shape
    assert jnp.allclose(out, ref, atol=1e-5, rtol=1e-5), "mismatch vs reference"
    print("KERNEL_OK")
</pallas_src>

<mosaic_0001>
module attributes {stable_mosaic.version = 11 : i64} {
  func.func @_channel_attention_kernel(%arg0: i32, %arg1: memref<1x8x128xf32, #tpu.memory_space<vmem>>, %arg2: memref<1x1x1xi32, #tpu.memory_space<vmem>>, %arg3: memref<5xf32, #tpu.memory_space<smem>>, %arg4: memref<1x8x128xf32, #tpu.memory_space<vmem>>) attributes {dimension_semantics = [#tpu.dimension_semantics<parallel>], iteration_bounds = array<i64: 2>, scalar_prefetch = 0 : i64, scratch_operands = 0 : i64, tpu.core_type = #tpu.core_type<tc>, window_params = [{transform_indices = @transform_0, window_bounds = array<i64: 1, 8, 128>}, {transform_indices = @transform_1, window_bounds = array<i64: 1, 1, 1>}, {transform_indices = @transform_2, window_bounds = array<i64: 5>}, {transform_indices = @transform_3, window_bounds = array<i64: 1, 8, 128>}]} {
    %c0 = arith.constant 0 : index
    %c0_0 = arith.constant 0 : index
    %c0_1 = arith.constant 0 : index
    %0 = vector.load %arg1[%c0, %c0_0, %c0_1] : memref<1x8x128xf32, #tpu.memory_space<vmem>>, vector<1x8x128xf32>
    %c0_2 = arith.constant 0 : index
    %c0_3 = arith.constant 0 : index
    %c0_4 = arith.constant 0 : index
    %1 = vector.load %arg2[%c0_2, %c0_3, %c0_4] : memref<1x1x1xi32, #tpu.memory_space<vmem>>, vector<1x1x1xi32>
    %2 = tpu.iota {dimensions = array<i32: 2>} : vector<1x1x128xi32>
    %c1_i32 = arith.constant 1 : i32
    %3 = vector.broadcast %c1_i32 : i32 to vector<1x1x1xi32>
    %4 = arith.maxsi %1, %3 : vector<1x1x1xi32>
    %5 = arith.sitofp %4 : vector<1x1x1xi32> to vector<1x1x1xf32>
    %cst = arith.constant 1.000000e+00 : f32
    %6 = vector.broadcast %cst : f32 to vector<1x1x1xf32>
    %7 = arith.divf %6, %5 : vector<1x1x1xf32>
    %8 = vector.broadcast %1 : vector<1x1x1xi32> to vector<1x1x128xi32>
    %9 = arith.cmpi slt, %2, %8 : vector<1x1x128xi32>
    %cst_5 = arith.constant 0.000000e+00 : f32
    %10 = vector.shape_cast %7 : vector<1x1x1xf32> to vector<1x1x1xf32>
    %11 = vector.broadcast %10 : vector<1x1x1xf32> to vector<1x1x128xf32>
    %12 = vector.broadcast %cst_5 : f32 to vector<1x1x128xf32>
    %13 = arith.select %9, %11, %12 : vector<1x1x128xi1>, vector<1x1x128xf32>
    %14 = vector.broadcast %13 : vector<1x1x128xf32> to vector<1x8x128xf32>
    %15 = arith.mulf %0, %14 : vector<1x8x128xf32>
    %cst_6 = arith.constant dense<0.000000e+00> : vector<1x8xf32>
    %16 = vector.multi_reduction <add>, %15, %cst_6 [2] : vector<1x8x128xf32> to vector<1x8xf32>
    %17 = vector.shape_cast %16 : vector<1x8xf32> to vector<1x8x1xf32>
    %cst_7 = arith.constant dense<0xFF800000> : vector<1x8xf32>
    %18 = vector.multi_reduction <maximumf>, %0, %cst_7 [2] : vector<1x8x128xf32> to vector<1x8xf32>
    %19 = vector.shape_cast %18 : vector<1x8xf32> to vector<1x8x1xf32>
    %20 = arith.addf %17, %19 : vector<1x8x1xf32>
    %cst_8 = arith.constant 0.000000e+00 : f32
    %21 = vector.broadcast %cst_8 : f32 to vector<1x2x1xf32>
    %22 = tpu.concatenate %21, %20, %21 in 1 : vector<1x2x1xf32>, vector<1x8x1xf32>, vector<1x2x1xf32> -> vector<1x12x1xf32>
    %c0_9 = arith.constant 0 : index
    %23 = memref.load %arg3[%c0_9] : memref<5xf32, #tpu.memory_space<smem>>
    %24 = vector.extract_strided_slice %22 {offsets = [0, 0, 0], sizes = [1, 8, 1], strides = [1, 1, 1]} : vector<1x12x1xf32> to vector<1x8x1xf32>
    %25 = vector.broadcast %23 : f32 to vector<1x8x1xf32>
    %26 = arith.mulf %25, %24 : vector<1x8x1xf32>
    %c1 = arith.constant 1 : index
    %27 = memref.load %arg3[%c1] : memref<5xf32, #tpu.memory_space<smem>>
    %28 = vector.extract_strided_slice %22 {offsets = [0, 1, 0], sizes = [1, 8, 1], strides = [1, 1, 1]} : vector<1x12x1xf32> to vector<1x8x1xf32>
    %29 = vector.broadcast %27 : f32 to vector<1x8x1xf32>
    %30 = arith.mulf %29, %28 : vector<1x8x1xf32>
    %31 = arith.addf %26, %30 : vector<1x8x1xf32>
    %c2 = arith.constant 2 : index
    %32 = memref.load %arg3[%c2] : memref<5xf32, #tpu.memory_space<smem>>
    %33 = vector.extract_strided_slice %22 {offsets = [0, 2, 0], sizes = [1, 8, 1], strides = [1, 1, 1]} : vector<1x12x1xf32> to vector<1x8x1xf32>
    %34 = vector.broadcast %32 : f32 to vector<1x8x1xf32>
    %35 = arith.mulf %34, %33 : vector<1x8x1xf32>
    %36 = arith.addf %31, %35 : vector<1x8x1xf32>
    %c3 = arith.constant 3 : index
    %37 = memref.load %arg3[%c3] : memref<5xf32, #tpu.memory_space<smem>>
    %38 = vector.extract_strided_slice %22 {offsets = [0, 3, 0], sizes = [1, 8, 1], strides = [1, 1, 1]} : vector<1x12x1xf32> to vector<1x8x1xf32>
    %39 = vector.broadcast %37 : f32 to vector<1x8x1xf32>
    %40 = arith.mulf %39, %38 : vector<1x8x1xf32>
    %41 = arith.addf %36, %40 : vector<1x8x1xf32>
    %c4 = arith.constant 4 : index
    %42 = memref.load %arg3[%c4] : memref<5xf32, #tpu.memory_space<smem>>
    %43 = vector.extract_strided_slice %22 {offsets = [0, 4, 0], sizes = [1, 8, 1], strides = [1, 1, 1]} : vector<1x12x1xf32> to vector<1x8x1xf32>
    %44 = vector.broadcast %42 : f32 to vector<1x8x1xf32>
    %45 = arith.mulf %44, %43 : vector<1x8x1xf32>
    %46 = arith.addf %41, %45 : vector<1x8x1xf32>
    %47 = arith.negf %46 : vector<1x8x1xf32>
    %48 = math.exp %47 : vector<1x8x1xf32>
    %cst_10 = arith.constant 1.000000e+00 : f32
    %49 = vector.broadcast %cst_10 : f32 to vector<1x8x1xf32>
    %50 = arith.addf %49, %48 : vector<1x8x1xf32>
    %51 = arith.divf %49, %50 : vector<1x8x1xf32>
    %52 = vector.broadcast %51 : vector<1x8x1xf32> to vector<1x8x128xf32>
    %53 = arith.mulf %0, %52 : vector<1x8x128xf32>
    %c0_11 = arith.constant 0 : index
    %c0_12 = arith.constant 0 : index
    %c0_13 = arith.constant 0 : index
    %54 = vector.load %arg4[%c0_11, %c0_12, %c0_13] : memref<1x8x128xf32, #tpu.memory_space<vmem>>, vector<1x8x128xf32>
    tpu.vector_store %arg4[%c0_11, %c0_12, %c0_13], %53 {strides = array<i32>} : memref<1x8x128xf32, #tpu.memory_space<vmem>>, vector<1x8x128xf32>,
    return
  }
  func.func @transform_0(%arg0: i32) -> (i32, i32, i32) {
    %c0_i32 = arith.constant 0 : i32
    %c0_i32_0 = arith.constant 0 : i32
    %c0_i32_1 = arith.constant 0 : i32
    return %arg0, %c0_i32, %c0_i32_0 : i32, i32, i32
  }
  func.func @transform_1(%arg0: i32) -> (i32, i32, i32) {
    %c0_i32 = arith.constant 0 : i32
    %c0_i32_0 = arith.constant 0 : i32
    %c0_i32_1 = arith.constant 0 : i32
    return %arg0, %c0_i32, %c0_i32_0 : i32, i32, i32
  }
  func.func @transform_2(%arg0: i32) -> i32 {
    %c0_i32 = arith.constant 0 : i32
    %c0_i32_0 = arith.constant 0 : i32
    return %c0_i32 : i32
  }
  func.func @transform_3(%arg0: i32) -> (i32, i32, i32) {
    %c0_i32 = arith.constant 0 : i32
    %c0_i32_0 = arith.constant 0 : i32
    %c0_i32_1 = arith.constant 0 : i32
    return %arg0, %c0_i32, %c0_i32_0 : i32, i32, i32
  }
}

</mosaic_0001>

<llo_original>
// kernel: tpu_custom_call.1
$region0: #{tpu_custom_call.1}
  #allocation0 [shape = 'u32[]', space=smem, size = 0x4, offset = 0x4, fixed_abs, tag = 'smem constant byte address 0x4 - core index']
  #allocation1 [shape = 'u32[144,128]{1,0:T(1,128)}', space=vmem, size = 0x12000, scoped, tag = 'internal scratch']
  %s0 = inlined_call_operand.hbm [shape: f32[2,8,128], index: 0, kind: input, shape index: {}]
  %s1 = inlined_call_operand.vmem [shape: s32[2,1,1], index: 1, kind: input, shape index: {}]
  %s2 = inlined_call_operand.vmem [shape: f32[5], index: 2, kind: input, shape index: {}]
  %s3 = inlined_call_operand.hbm [shape: f32[2,8,128], index: 3, kind: output, shape index: {}]
  %s4 = sld [smem:[#allocation0]]
  $region53: #{tpu_custom_call.1} parent=0
    _
  %s6 = ssub.s32 1, %s4
  %s7 = scalar_select 0, %s6, %s4
  $region1: #{tpu_custom_call.1} parent=0
    #allocation2 [shape = 'u8[8192]{0}', space=vmem, size = 0x2000, scoped, tag = 'input window, operand 0']
    #allocation3 [shape = 's32[2]{0}', space=sflag, size = 0x8, scoped, tag = 'scoped memory for tpu_custom_call.1']
    #allocation4 [shape = 's32[2]{0}', space=sflag, size = 0x8, scoped, tag = 'scoped memory for tpu_custom_call.1']
    #allocation5 [shape = 's32[2]{0}', space=sflag, size = 0x8, scoped, tag = 'scoped memory for tpu_custom_call.1']
    #allocation6 [shape = 'u8[512]{0}', space=smem, size = 0x200, scoped, tag = 'input window, operand 2, single buffered']
    #allocation7 [shape = 'u8[8192]{0}', space=vmem, size = 0x2000, scoped, tag = 'output window, operand 0']
    %8 = vsyncpa [#allocation3], 0
    %s9 = scalar_lea.sflag [#allocation3], 1
    %10 = vsyncpa %s9, 0
    %11 = vsyncpa [#allocation5], 0
    %12 = vsyncpa [#allocation4], 0
    %s13 = scalar_lea.sflag [#allocation4], 1
    %14 = vsyncpa %s13, 0
    loop: start=0, step=1, limit=4
    $region2: #{tpu_custom_call.1} parent=1 // loop_pre_header
      _
    $region3: #{tpu_custom_call.1} parent=1 // loop_header
      %s16 = sphi 0, %s20
      %p17 = scmp.ge.s32.totalorder %s16, 4
      %s26 = sphi 0, %s28
      %s29 = sphi 0, %s26
      %s30 = sphi 0, %s29
      %s46 = sphi 0, %s30
      %s52 = sphi 0, %s54
      %s55 = sphi 0, %s52
      %s56 = sphi 0, %s55
      %s72 = sphi 0, %s56
      %s76 = sphi 0, %s76
      %s78 = sphi 0, %s76
      %s79 = sphi 0, %s78
      %s93 = sphi 0, %s79
      %s99 = sphi 0, %s101
      %s102 = sphi 0, %s99
      %s103 = sphi 0, %s102
      %s119 = sphi 0, %s103
    $region4: #{tpu_custom_call.1} parent=1 // loop_header_branch
      %19 = sbr.rel (%p17) target = $region8
    $region5: #{tpu_custom_call.1} parent=1 // loop_body
      %s21 = ssub.s32 %s16, 1
      %s22 = ssub.s32 %s16, 2
      %s23 = sadd.s32 %s16, 1
      %s24 = ssub.s32 %s16, %s23
      %p25 = scmp.eq.s32.totalorder %s24, 0
      %s27 = sadd.s32 %s26, 1
      %s28 = scalar_select %p25, %s26, %s27
      %p31 = pneg %p25
      %p32 = scmp.eq.s32.totalorder %s16, 1
      %p33 = por %p31, %p32
      %p34 = scmp.ne.s32.totalorder %s26, %s29
      %p35 = scmp.eq.s32.totalorder %s16, 0
      %p36 = por %p34, %p35
      %p37 = scmp.ne.s32.totalorder %s26, %s29
      %p38 = scmp.eq.s32.totalorder %s21, 1
      %p39 = por %p37, %p38
      %p40 = scmp.ne.s32.totalorder %s29, %s30
      %p41 = scmp.eq.s32.totalorder %s21, 0
      %p42 = por %p40, %p41
      %p43 = scmp.ne.s32.totalorder %s29, %s30
      %p44 = scmp.eq.s32.totalorder %s22, 1
      %p45 = por %p43, %p44
      %p47 = scmp.ne.s32.totalorder %s30, %s46
      %p48 = scmp.eq.s32.totalorder %s22, 0
      %p49 = por %p47, %p48
      %s50 = ssub.s32 %s16, %s23
      %p51 = scmp.eq.s32.totalorder %s50, 0
      %s53 = sadd.s32 %s52, 1
      %s54 = scalar_select %p51, %s52, %s53
      %p57 = pneg %p51
      %p58 = scmp.eq.s32.totalorder %s16, 1
      %p59 = por %p57, %p58
      %p60 = scmp.ne.s32.totalorder %s52, %s55
      %p61 = scmp.eq.s32.totalorder %s16, 0
      %p62 = por %p60, %p61
      %p63 = scmp.ne.s32.totalorder %s52, %s55
      %p64 = scmp.eq.s32.totalorder %s21, 1
      %p65 = por %p63, %p64
      %p66 = scmp.ne.s32.totalorder %s55, %s56
      %p67 = scmp.eq.s32.totalorder %s21, 0
      %p68 = por %p66, %p67
      %p69 = scmp.ne.s32.totalorder %s55, %s56
      %p70 = scmp.eq.s32.totalorder %s22, 1
      %p71 = por %p69, %p70
      %p73 = scmp.ne.s32.totalorder %s56, %s72
      %p74 = scmp.eq.s32.totalorder %s22, 0
      %p75 = por %p73, %p74
      %s77 = sadd.s32 %s76, 1
      %p80 = scmp.eq.s32.totalorder %s16, 1
      %p81 = scmp.ne.s32.totalorder %s76, %s78
      %p82 = scmp.eq.s32.totalorder %s16, 0
      %p83 = por %p81, %p82
      %p84 = scmp.ne.s32.totalorder %s76, %s78
      %p85 = scmp.eq.s32.totalorder %s21, 1
      %p86 = por %p84, %p85
      %p87 = scmp.ne.s32.totalorder %s78, %s79
      %p88 = scmp.eq.s32.totalorder %s21, 0
      %p89 = por %p87, %p88
      %p90 = scmp.ne.s32.totalorder %s78, %s79
      %p91 = scmp.eq.s32.totalorder %s22, 1
      %p92 = por %p90, %p91
      %p94 = scmp.ne.s32.totalorder %s79, %s93
      %p95 = scmp.eq.s32.totalorder %s22, 0
      %p96 = por %p94, %p95
      %s97 = ssub.s32 %s16, %s23
      %p98 = scmp.eq.s32.totalorder %s97, 0
      %s100 = sadd.s32 %s99, 1
      %s101 = scalar_select %p98, %s99, %s100
      %p104 = pneg %p98
      %p105 = scmp.eq.s32.totalorder %s16, 1
      %p106 = por %p104, %p105
      %p107 = scmp.ne.s32.totalorder %s99, %s102
      %p108 = scmp.eq.s32.totalorder %s16, 0
      %p109 = por %p107, %p108
      %p110 = scmp.ne.s32.totalorder %s99, %s102
      %p111 = scmp.eq.s32.totalorder %s21, 1
      %p112 = por %p110, %p111
      %p113 = scmp.ne.s32.totalorder %s102, %s103
      %p114 = scmp.eq.s32.totalorder %s21, 0
      %p115 = por %p113, %p114
      %p116 = scmp.ne.s32.totalorder %s102, %s103
      %p117 = scmp.eq.s32.totalorder %s22, 1
      %p118 = por %p116, %p117
      %p120 = scmp.ne.s32.totalorder %s103, %s119
      %p121 = scmp.eq.s32.totalorder %s22, 0
      %p122 = por %p120, %p121
      %p123 = scmp.le.s32.totalorder 1, %s16
      %p124 = scmp.lt.s32.totalorder %s16, 3
      %p125 = pnand %p123, %p124
      %p126 = pneg %p125
      // Predicated region
      $region9: #{tpu_custom_call.1} parent=5 // pred_check
        _
      $region10: #{tpu_custom_call.1} parent=5 // pred_check_branch
        %128 = sbr.rel (%p125) target = $region12
      $region11: #{tpu_custom_call.1} parent=5 // pred_region
        %s129 = ssub.s32 %s16, 1
        // Predicated region
        $region13: #{tpu_custom_call.1} parent=11 // pred_check
          %p130 = pneg %p89
        $region14: #{tpu_custom_call.1} parent=11 // pred_check_branch
          %132 = sbr.rel (%p130) target = $region16
        $region15: #{tpu_custom_call.1} parent=11 // pred_region
          %s134 = ssub.s32 16, 16
          %135 = vsyncadd [#allocation5], %s134
          %s137 = sshll.u32 %s2, 4
          %s138 = int_to_ptr.vmem [resolvable:$true] %s137
          %140 = dma.vmem_to_smem %s138, 16, [#allocation6], [#allocation5]
        $region16: #{tpu_custom_call.1} parent=11 // pred_fallthru
          _
      $region12: #{tpu_custom_call.1} parent=5 // pred_fallthru
        _
      %p141 = scmp.lt.s32.totalorder %s16, 2
      // Predicated region
      $region17: #{tpu_custom_call.1} parent=5 // pred_check
        %p142 = pneg %p141
      $region18: #{tpu_custom_call.1} parent=5 // pred_check_branch
        %144 = sbr.rel (%p142) target = $region20
      $region19: #{tpu_custom_call.1} parent=5 // pred_region
        // Predicated region
        $region21: #{tpu_custom_call.1} parent=19 // pred_check
          %p145 = pneg %p36
        $region22: #{tpu_custom_call.1} parent=19 // pred_check_branch
          %147 = sbr.rel (%p145) target = $region24
        $region23: #{tpu_custom_call.1} parent=19 // pred_region
          %s148 = sand.u32 %s26, 1
          %s149 = scalar_lea.sflag [#allocation3], %s148
          %s150 = sand.u32 %s26, 1
          %s151 = smul.addr %s150, 8
          %s152 = scalar_lea.vmem [#allocation2], %s151
          %s154 = ssub.s32 128, 128
          %155 = vsyncadd %s149, %s154
          %s156 = smul.addr %s16, 128
          %s157 = scalar_lea.hbm %s0, %s156
          %s159 = sshll.u32 %s152, 4
          %s160 = int_to_ptr.vmem [resolvable:$true] %s159
          %162 = dma.hbm_to_vmem [thread:$0]  %s157, 128, %s160, %s149
        $region24: #{tpu_custom_call.1} parent=19 // pred_fallthru
          _
        // Predicated region
        $region25: #{tpu_custom_call.1} parent=19 // pred_check
          %p163 = pneg %p62
        $region26: #{tpu_custom_call.1} parent=19 // pred_check_branch
          %165 = sbr.rel (%p163) target = $region28
        $region27: #{tpu_custom_call.1} parent=19 // pred_region
          %p166 = scmp.lt.s32.totalorder %s16, 1
          %s167 = scalar_select %p166, %s16, 1
          %s168 = scalar_lea.vmem %s1, %s167
        $region28: #{tpu_custom_call.1} parent=19 // pred_fallthru
          _
      $region20: #{tpu_custom_call.1} parent=5 // pred_fallthru
        _
      %p169 = scmp.le.s32.totalorder 1, %s16
      %p170 = scmp.lt.s32.totalorder %s16, 3
      %p171 = pnand %p169, %p170
      %p172 = pneg %p171
      // Predicated region
      $region29: #{tpu_custom_call.1} parent=5 // pred_check
        _
      $region30: #{tpu_custom_call.1} parent=5 // pred_check_branch
        %174 = sbr.rel (%p171) target = $region32
      $region31: #{tpu_custom_call.1} parent=5 // pred_region
        %s175 = ssub.s32 %s16, 1
        %s176 = sand.u32 %s29, 1
        %s177 = scalar_lea.sflag [#allocation3], %s176
        %s178 = sand.u32 %s29, 1
        %s179 = smul.addr %s178, 8
        %s180 = scalar_lea.vmem [#allocation2], %s179
        // Predicated region
        $region33: #{tpu_custom_call.1} parent=31 // pred_check
          %p181 = pneg %p42
        $region34: #{tpu_custom_call.1} parent=31 // pred_check_branch
          %183 = sbr.rel (%p181) target = $region36
        $region35: #{tpu_custom_call.1} parent=31 // pred_region
          %184 = dma.done %s177, 128
        $region36: #{tpu_custom_call.1} parent=31 // pred_fallthru
          _
        // Predicated region
        $region37: #{tpu_custom_call.1} parent=31 // pred_check
          %p185 = pneg %p89
        $region38: #{tpu_custom_call.1} parent=31 // pred_check_branch
          %187 = sbr.rel (%p185) target = $region40
        $region39: #{tpu_custom_call.1} parent=31 // pred_region
          %188 = dma.done [#allocation5], 16
        $region40: #{tpu_custom_call.1} parent=31 // pred_fallthru
          _
        %189 = sfence
        %s190 = sand.u32 %s29, 1
        %s191 = scalar_lea.sflag [#allocation3], %s190
        %s192 = sand.u32 %s29, 1
        %s193 = smul.addr %s192, 8
        %s194 = scalar_lea.vmem [#allocation2], %s193
        %p195 = pneg %p42
        %p196 = pneg %p39
        %p197 = scmp.lt.s32.totalorder %s21, 1
        %s198 = scalar_select %p197, %s21, 1
        %s199 = scalar_lea.vmem %s1, %s198
        %p200 = pneg %p68
        %p201 = pneg %p65
        %p202 = pneg %p89
        %p203 = pneg %p86
        %p204 = pneg %p115
        %p205 = pneg %p112
        %s206 = sand.u32 %s102, 1
        %s207 = scalar_lea.sflag [#allocation4], %s206
        %s208 = sand.u32 %s102, 1
        %s209 = smul.addr %s208, 8
        %s210 = scalar_lea.vmem [#allocation7], %s209
        %p211 = scmp.lt.s32.totalorder %s21, 1
        %s212 = scalar_select %p211, %s21, 1
        %s213 = scalar_lea.vmem %s1, %s212
        %v214 = vld [vmem:[%s180] sm:$0xff]
        %v215 = vld [vmem:[%s213] sm:$0x1]
        %v216 = vlaneseq
        %v217 = vand.u32 %v216, 127
        %vm218 = vcmp.gt.s32.totalorder %v215, 1
        %v219 = vsel %vm218, %v215, 1
        %v220 = vcvt.s32.f32 %v219
        %v221 = vrcp.pop %v220
        %v222 = vmul.f32 1.0, %v221
        %223 = vset.pattern.permute.xlu0 0
        %224 = vperm.xlu0 %223, %v215
        %v225 = vpop.permute.xlu0 %224
        %v226 = vlaneseq
        %v227 = vshrl.u32 %v226, 7
        %v228 = vsub.s32 0, %v227
        %v229 = vrot.slane %v225, %v228
        %vm230 = vcmp.lt.s32.totalorder %v217, %v229
        %232 = vset.pattern.permute.xlu0 0
        %233 = vperm.xlu0 %232, %v222
        %v234 = vpop.permute.xlu0 %233
        %v236 = vlaneseq
        %v237 = vshrl.u32 %v236, 7
        %v238 = vsub.s32 0, %v237
        %v239 = vrot.slane %v234, %v238
        %v240 = vsel %vm230, %v239, 0.0
        %v241 = vmul.f32 %v214, %v240
        %242 = vadd.xlane.f32.xlu0 %v241
        %v243 = vpop.xlane.xlu0 %242
        %244 = vmax.xlane.f32.xlu0 %v214
        %v245 = vpop.xlane.xlu0 %244
        %v246 = vadd.f32 %v243, %v245
        %v248 = vrot.slane %v246, 6
        %vm250 = vcmask 1041408
        %v251 = vsel %vm250, 0.0, %v248
        %v252 = vsel %vm250, %v248, 0.0
        %s253 = sld [smem:[#allocation6]]
        %v254 = vstv %s253
        %v255 = vmul.f32 %v254, %v251
        %s256 = sld [smem:[#allocation6 + $0x1]]
        %v257 = vstv %s256
        %v258 = vmul.f32 %v257, %v251
        %v259 = vmul.f32 %v257, %v252
        %vm262 = vcmask 1046528
        %v263 = vrot.slane %v258, 1
        %v264 = vrot.slane %v259, 1
        %v265 = vsel %vm262, %v263, %v264
        %v267 = vadd.f32 %v255, %v265
        %s268 = sld [smem:[#allocation6 + $0x2]]
        %v269 = vstv %s268
        %v270 = vmul.f32 %v269, %v251
        %v271 = vmul.f32 %v269, %v252
        %vm274 = vcmask 1045504
        %v275 = vrot.slane %v270, 2
        %v276 = vrot.slane %v271, 2
        %v277 = vsel %vm274, %v275, %v276
        %v279 = vadd.f32 %v267, %v277
        %s280 = sld [smem:[#allocation6 + $0x3]]
        %v281 = vstv %s280
        %v282 = vmul.f32 %v281, %v251
        %v283 = vmul.f32 %v281, %v252
        %vm286 = vcmask 1044480
        %v287 = vrot.slane %v282, 3
        %v288 = vrot.slane %v283, 3
        %v289 = vsel %vm286, %v287, %v288
        %v291 = vadd.f32 %v279, %v289
        %s292 = sld [smem:[#allocation6 + $0x4]]
        %v293 = vstv %s292
        %v294 = vmul.f32 %v293, %v251
        %v295 = vmul.f32 %v293, %v252
        %vm298 = vcmask 1043456
        %v299 = vrot.slane %v294, 4
        %v300 = vrot.slane %v295, 4
        %v301 = vsel %vm298, %v299, %v300
        %v303 = vadd.f32 %v291, %v301
        %v304 = vxor.u32 %v303, 2147483648
        %v305 = vmul.f32 %v304, 1.442695
        %v306 = vpow.pop %v305
        %v307 = vadd.f32 %v306, 1.0
        %v308 = vrcp.pop %v307
        %v309 = vmul.f32 1.0, %v308
        %311 = vset.pattern.permute.xlu0 0
        %312 = vperm.xlu0 %311, %v309
        %v313 = vpop.permute.xlu0 %312
        %v315 = vmul.f32 %v214, %v313
        %316 = vst [vmem:[%s210] sm:$0xff] %v315
        %s317 = sand.u32 %s102, 1
        %s318 = scalar_lea.sflag [#allocation4], %s317
        %s319 = sand.u32 %s102, 1
        %s320 = smul.addr %s319, 8
        %s321 = scalar_lea.vmem [#allocation7], %s320
        // Predicated region
        $region41: #{tpu_custom_call.1} parent=31 // pred_check
          %p322 = pneg %p112
        $region42: #{tpu_custom_call.1} parent=31 // pred_check_branch
          %324 = sbr.rel (%p322) target = $region44
        $region43: #{tpu_custom_call.1} parent=31 // pred_region
          %s326 = ssub.s32 128, 128
          %327 = vsyncadd %s318, %s326
          %s328 = smul.addr %s21, 128
          %s329 = scalar_lea.hbm %s3, %s328
          %s331 = sshll.u32 %s321, 4
          %s332 = int_to_ptr.vmem [resolvable:$true] %s331
          %334 = dma.vmem_to_hbm [thread:$0]  %s332, 128, %s329, %s318
        $region44: #{tpu_custom_call.1} parent=31 // pred_fallthru
          _
      $region32: #{tpu_custom_call.1} parent=5 // pred_fallthru
        _
      %p335 = scmp.le.s32.totalorder 2, %s16
      // Predicated region
      $region45: #{tpu_custom_call.1} parent=5 // pred_check
        %p336 = pneg %p335
      $region46: #{tpu_custom_call.1} parent=5 // pred_check_branch
        %338 = sbr.rel (%p336) target = $region48
      $region47: #{tpu_custom_call.1} parent=5 // pred_region
        %s339 = ssub.s32 %s16, 2
        // Predicated region
        $region49: #{tpu_custom_call.1} parent=47 // pred_check
          %p340 = pneg %p118
        $region50: #{tpu_custom_call.1} parent=47 // pred_check_branch
          %342 = sbr.rel (%p340) target = $region52
        $region51: #{tpu_custom_call.1} parent=47 // pred_region
          %s343 = sand.u32 %s103, 1
          %s344 = scalar_lea.sflag [#allocation4], %s343
          %s345 = sand.u32 %s103, 1
          %s346 = smul.addr %s345, 8
          %s347 = scalar_lea.vmem [#allocation7], %s346
          %348 = dma.done %s344, 128
        $region52: #{tpu_custom_call.1} parent=47 // pred_fallthru
          _
      $region48: #{tpu_custom_call.1} parent=5 // pred_fallthru
        _
    $region6: #{tpu_custom_call.1} parent=1 // loop_footer
      %s20 = sadd.s32 1, %s16
    $region7: #{tpu_custom_call.1} parent=1 // loop_footer_branch
      %15 = sbr.rel target = $region3
    $region8: #{tpu_custom_call.1} parent=1 // loop_exit
      _
    %349 = vsyncpa [#allocation3], 1
    %s350 = scalar_lea.sflag [#allocation3], 1
    %351 = vsyncpa %s350, 1
    %352 = vsyncpa [#allocation4], 1
    %s353 = scalar_lea.sflag [#allocation4], 1
    %354 = vsyncpa %s353, 1
    %355 = vsyncpa [#allocation5], 1
    %s356 = scalar_lea.sflag [#allocation5], 1
    %357 = vsyncpa %s356, 1

</llo_original>
